<compile_context>
chip_gen: v6e
topology: v6e:2x2x1
jax: 0.10.0
libtpu: 0.0.40
codegen_flags: <defaults>
</compile_context>

<pallas_src>
import functools
from math import sqrt

import jax
import jax.numpy as jnp
from jax import lax
from jax.experimental import pallas as pl
from jax.experimental.pallas import tpu as pltpu


def _round_up(x, m):
    return ((x + m - 1) // m) * m


def _sublane_multiple(dtype):
    # f32 -> 8 rows per tile, bf16 -> 16, int8/fp8 -> 32 (packed sublanes).
    return 8 * max(1, 4 // jnp.dtype(dtype).itemsize)


def _default_tq():
    # v5e's MXU is 4x128^2, so tq=256 buys nothing over 128 there while doubling
    # the live (tq, Np) f32 softmax intermediates; v6e/v7x (256x256 MXU) want 256.
    try:
        kind = jax.devices()[0].device_kind.lower()
    except Exception:
        return 256
    if "v5e" in kind or "v5 lite" in kind or "v5litepod" in kind:
        return 128
    return 256


def _k_proj_kernel(text_ref, wkT_ref, k_ref):
    # One-shot K projection: K = text @ Wk^T (weight pre-transposed in the
    # wrapper -> plain NN-form MXU matmul, no in-kernel transpose).
    k_ref[...] = jnp.dot(text_ref[...], wkT_ref[...],
                         preferred_element_type=jnp.float32).astype(k_ref.dtype)


def _joint_attn_kernel(kv_ref, k_ref, wqT_ref, out_ref, *,
                       norm_fact, n_real, hp, tq, n_pad):
    # Query rows for this grid step come straight out of the resident
    # [img | text] slab via a ref-level slice (tq multiple of 8, hp multiple of
    # 128 -> tile-aligned, no extra HBM DMA).
    row = pl.multiple_of(pl.program_id(0) * tq, tq)
    x = kv_ref[pl.ds(row, tq), pl.ds(0, hp)]                    # (tq, Hp) img rows

    # Q projection, NN form with the pre-transposed weight.
    q = jnp.dot(x, wqT_ref[...], preferred_element_type=jnp.float32)   # (tq, Hp)

    # Scores S = Q K^T in NT form (MXU consumes K directly, no XLU transpose).
    nt = (((1,), (1,)), ((), ()))
    s = lax.dot_general(q.astype(k_ref.dtype), k_ref[...], nt,
                        preferred_element_type=jnp.float32)            # (tq, Np)

    if n_pad > n_real:                                          # mask padded keys
        col = lax.broadcasted_iota(jnp.int32, s.shape, 1)
        s = jnp.where(col < n_real, s, -jnp.inf)

    # Softmax over keys (dim=1); the reference's POST-softmax 1/sqrt(H) scale is
    # folded into the per-row reciprocal (single VPU multiply).
    m = jnp.max(s, axis=1, keepdims=True)
    e = jnp.exp(s - m)
    denom = jnp.sum(e, axis=1, keepdims=True)
    a = e * (pl.reciprocal(denom, approx=False) * norm_fact)

    # Fused output matmul: A @ [img | text] -> one MXU pass for both outputs.
    out = jnp.dot(a.astype(kv_ref.dtype), kv_ref[...],
                  preferred_element_type=jnp.float32)
    out_ref[...] = out.astype(out_ref.dtype)


def joint_attention_layer(img, text, wq, wk, *, tq_max=None, slab_dtype=None,
                          interpret=False):
    """Pallas TPU implementation of Joint_Attention_Layer.forward."""
    n, h = img.shape
    assert text.shape == (n, h)
    assert wq.shape == (h, h) and wk.shape == (h, h)
    norm_fact = 1.0 / sqrt(h)

    out_dtype = img.dtype
    # Optional low-precision slab (pass slab_dtype=jnp.bfloat16 on v6e/v7x:
    # MXU-native and halves the dominant (Np, 2Hp) slab's HBM/VMEM footprint).
    # Softmax math stays f32 via preferred_element_type either way.
    cdtype = jnp.dtype(slab_dtype) if slab_dtype is not None else jnp.dtype(out_dtype)
    esize = cdtype.itemsize

    if tq_max is None:
        tq_max = _default_tq()

    # Lane-dense padding: hidden -> multiple of 128; rows -> packed sublane tile
    # of the slab dtype (8 f32 / 16 bf16 / 32 int8) and a multiple of the tile.
    sub = _sublane_multiple(cdtype)
    hp = _round_up(h, 128)
    n_pad = _round_up(n, sub)
    tq = min(n_pad, tq_max)
    n_pad = _round_up(n_pad, tq)

    img_p = jnp.pad(img.astype(cdtype), ((0, n_pad - n), (0, hp - h)))
    text_p = jnp.pad(text.astype(cdtype), ((0, n_pad - n), (0, hp - h)))
    # Pre-transposed weights (free: DMA'd once) -> plain (M,K)x(K,N) MXU feeds.
    wqT_p = jnp.pad(wq.T.astype(cdtype), ((0, hp - h), (0, hp - h)))
    wkT_p = jnp.pad(wk.T.astype(cdtype), ((0, hp - h), (0, hp - h)))
    fused = jnp.concatenate([img_p, text_p], axis=1)            # (Np, 2*Hp)

    grid = (n_pad // tq,)

    # ---- advisory cost estimates (K projection counted exactly once) -------
    k_cost = pl.CostEstimate(
        flops=2 * n_pad * hp * hp,
        transcendentals=0,
        bytes_accessed=(2 * n_pad * hp + hp * hp) * esize,
    )
    attn_cost = pl.CostEstimate(
        flops=2 * (n_pad * hp * hp              # Q projection (once per row)
                   + n_pad * n_pad * hp         # scores Q K^T
                   + n_pad * n_pad * 2 * hp),   # fused A @ [img|text]
        transcendentals=n_pad * n_pad,          # exp in softmax
        bytes_accessed=(n_pad * 2 * hp          # fused slab read
                        + n_pad * hp            # K read
                        + hp * hp               # WqT read
                        + n_pad * 2 * hp) * esize,   # output write
    )

    # ---- explicit scoped-VMEM limits (default 16/32 MiB is far below phys) --
    def _vmem_limit(buffer_bytes):
        return int(min(max(2 * buffer_bytes + (8 << 20), 32 << 20), 100 << 20))

    attn_buffers = (n_pad * 2 * hp * esize          # fused slab (resident)
                    + n_pad * hp * esize            # K (resident)
                    + hp * hp * esize               # WqT
                    + 2 * tq * 2 * hp * esize       # double-buffered output tile
                    + 3 * tq * n_pad * 4)           # f32 score/exp intermediates
    k_buffers = 2 * 2 * tq * hp * esize + hp * hp * esize

    # TODO(synk): verify with a profile that "parallel" actually shards the
    # query axis across both v7x TensorCores; if not, switch to CORE_PARALLEL.
    attn_params = pltpu.CompilerParams(
        dimension_semantics=("parallel",),
        vmem_limit_bytes=_vmem_limit(attn_buffers))
    k_params = pltpu.CompilerParams(
        dimension_semantics=("parallel",),
        vmem_limit_bytes=_vmem_limit(k_buffers))

    attn_kernel = functools.partial(_joint_attn_kernel, norm_fact=norm_fact,
                                    n_real=n, hp=hp, tq=tq, n_pad=n_pad)

    def _run(single_buffer):
        def _const(shape):
            idx = lambda i, _r=len(shape): (0,) * _r
            if single_buffer:
                # Constant index map -> the 2nd pipeline buffer is never used;
                # single-buffering halves the resident VMEM for these operands.
                return pl.BlockSpec(shape, idx, pipeline_mode=pl.Buffered(1))
            return pl.BlockSpec(shape, idx)

        # Stage 1: one-shot K projection (hoisted out of the per-tile kernel).
        k_mat = pl.pallas_call(
            _k_proj_kernel,
            out_shape=jax.ShapeDtypeStruct((n_pad, hp), cdtype),
            grid=grid,
            in_specs=[pl.BlockSpec((tq, hp), lambda i: (i, 0)),
                      _const((hp, hp))],
            out_specs=pl.BlockSpec((tq, hp), lambda i: (i, 0)),
            compiler_params=k_params,
            cost_estimate=k_cost,
            interpret=interpret,
        )(text_p, wkT_p)

        # Stage 2: attention over query-row tiles. Query rows are sliced from
        # the resident fused slab inside the kernel (no duplicate q-tile DMA).
        # TODO(synk): for very large N (resident slab / (tq, N) scores exceed
        # VMEM, esp. v7x's 64 MiB/TC) add a flash-style KV grid axis
        # ("arbitrary") with online-softmax m/l/acc scratch.
        out = pl.pallas_call(
            attn_kernel,
            out_shape=jax.ShapeDtypeStruct((n_pad, 2 * hp), out_dtype),
            grid=grid,
            in_specs=[_const((n_pad, 2 * hp)),   # fused [img|text] values
                      _const((n_pad, hp)),       # precomputed K
                      _const((hp, hp))],         # WqT
            out_specs=pl.BlockSpec((tq, 2 * hp), lambda i: (i, 0)),
            compiler_params=attn_params,
            cost_estimate=attn_cost,
            interpret=interpret,
        )(fused, k_mat, wqT_p)
        return out

    try:
        out = _run(single_buffer=True)
    except Exception:
        # Fallback for Pallas builds that reject pl.Buffered(1) on a pallas_call
        # BlockSpec; identical kernels with default double-buffering.
        out = _run(single_buffer=False)

    out_img = out[:n, :h]
    out_text = out[:n, hp:hp + h]
    return out_img, out_text


def _reference(img, text, wq, wk):
    """Pure-JAX reference mirroring the PyTorch forward."""
    h = img.shape[1]
    norm_fact = 1.0 / sqrt(h)
    q = img @ wq.T
    k = (text @ wk.T).T                 # torch.transpose(K_linear(text), 1, 0)
    s = q @ k
    a = jax.nn.softmax(s, axis=1) * norm_fact
    return a @ img, a @ text


if __name__ == "__main__":
    N, H = 8, 32  # sequence length (shared by img/text) and hidden_dim

    key = jax.random.PRNGKey(0)
    k_img, k_txt, k_wq, k_wk = jax.random.split(key, 4)

    img = jax.random.normal(k_img, (N, H), dtype=jnp.float32)
    text = jax.random.normal(k_txt, (N, H), dtype=jnp.float32)

    # Deterministic nn.Linear-style init: U(-1/sqrt(H), 1/sqrt(H)), shape (H, H)
    bound = 1.0 / sqrt(H)
    wq = jax.random.uniform(k_wq, (H, H), jnp.float32, -bound, bound)
    wk = jax.random.uniform(k_wk, (H, H), jnp.float32, -bound, bound)

    out_img, out_text = joint_attention_layer(img, text, wq, wk)
    jax.block_until_ready((out_img, out_text))

    ref_img, ref_text = _reference(img, text, wq, wk)
    assert jnp.allclose(out_img, ref_img, atol=1e-5, rtol=1e-5)
    assert jnp.allclose(out_text, ref_text, atol=1e-5, rtol=1e-5)

    print("KERNEL_OK")
</pallas_src>

<mosaic_0001>
module attributes {stable_mosaic.version = 11 : i64} {
  func.func @_k_proj_kernel(%arg0: i32, %arg1: memref<8x128xf32, #tpu.memory_space<vmem>>, %arg2: memref<128x128xf32, #tpu.memory_space<vmem>>, %arg3: memref<8x128xf32, #tpu.memory_space<vmem>>) attributes {dimension_semantics = [#tpu.dimension_semantics<parallel>], iteration_bounds = array<i64: 1>, scalar_prefetch = 0 : i64, scratch_operands = 0 : i64, tpu.core_type = #tpu.core_type<tc>, window_params = [{transform_indices = @transform_0, window_bounds = array<i64: 8, 128>}, {pipeline_mode = #tpu.pipeline_mode<synchronous>, transform_indices = @transform_1, window_bounds = array<i64: 128, 128>}, {transform_indices = @transform_2, window_bounds = array<i64: 8, 128>}]} {
    %c0 = arith.constant 0 : index
    %c0_0 = arith.constant 0 : index
    %0 = vector.load %arg1[%c0, %c0_0] : memref<8x128xf32, #tpu.memory_space<vmem>>, vector<8x128xf32>
    %c0_1 = arith.constant 0 : index
    %c0_2 = arith.constant 0 : index
    %1 = vector.load %arg2[%c0_1, %c0_2] : memref<128x128xf32, #tpu.memory_space<vmem>>, vector<128x128xf32>
    %cst = arith.constant dense<0.000000e+00> : vector<8x128xf32>
    %2 = tpu.matmul %0, %1, %cst {dimension_numbers = #tpu.dot_dimension_numbers<[1], [0], [0], [1], [0, 0, 1, 1], [], []>} : vector<8x128xf32>, vector<128x128xf32>, vector<8x128xf32> -> vector<8x128xf32>
    %c0_3 = arith.constant 0 : index
    %c0_4 = arith.constant 0 : index
    %3 = vector.load %arg3[%c0_3, %c0_4] : memref<8x128xf32, #tpu.memory_space<vmem>>, vector<8x128xf32>
    tpu.vector_store %arg3[%c0_3, %c0_4], %2 {strides = array<i32>} : memref<8x128xf32, #tpu.memory_space<vmem>>, vector<8x128xf32>,
    return
  }
  func.func @transform_0(%arg0: i32) -> (i32, i32) {
    %c0_i32 = arith.constant 0 : i32
    %c0_i32_0 = arith.constant 0 : i32
    return %arg0, %c0_i32 : i32, i32
  }
  func.func @transform_1(%arg0: i32) -> (i32, i32) {
    %c0_i32 = arith.constant 0 : i32
    %c0_i32_0 = arith.constant 0 : i32
    %c0_i32_1 = arith.constant 0 : i32
    return %c0_i32, %c0_i32_0 : i32, i32
  }
  func.func @transform_2(%arg0: i32) -> (i32, i32) {
    %c0_i32 = arith.constant 0 : i32
    %c0_i32_0 = arith.constant 0 : i32
    return %arg0, %c0_i32 : i32, i32
  }
}

module attributes {stable_mosaic.version = 11 : i64} {
  func.func @_k_proj_kernel(%arg0: i32, %arg1: memref<8x128xf32, #tpu.memory_space<vmem>>, %arg2: memref<128x128xf32, #tpu.memory_space<vmem>>, %arg3: memref<8x128xf32, #tpu.memory_space<vmem>>) attributes {dimension_semantics = [#tpu.dimension_semantics<parallel>], iteration_bounds = array<i64: 1>, scalar_prefetch = 0 : i64, scratch_operands = 0 : i64, tpu.core_type = #tpu.core_type<tc>, window_params = [{transform_indices = @transform_0, window_bounds = array<i64: 8, 128>}, {pipeline_mode = #tpu.pipeline_mode<synchronous>, transform_indices = @transform_1, window_bounds = array<i64: 128, 128>}, {transform_indices = @transform_2, window_bounds = array<i64: 8, 128>}]} {
    %c0 = arith.constant 0 : index
    %c0_0 = arith.constant 0 : index
    %0 = vector.load %arg1[%c0, %c0_0] : memref<8x128xf32, #tpu.memory_space<vmem>>, vector<8x128xf32>
    %c0_1 = arith.constant 0 : index
    %c0_2 = arith.constant 0 : index
    %1 = vector.load %arg2[%c0_1, %c0_2] : memref<128x128xf32, #tpu.memory_space<vmem>>, vector<128x128xf32>
    %cst = arith.constant dense<0.000000e+00> : vector<8x128xf32>
    %2 = tpu.matmul %0, %1, %cst {dimension_numbers = #tpu.dot_dimension_numbers<[1], [0], [0], [1], [0, 0, 1, 1], [], []>} : vector<8x128xf32>, vector<128x128xf32>, vector<8x128xf32> -> vector<8x128xf32>
    %c0_3 = arith.constant 0 : index
    %c0_4 = arith.constant 0 : index
    %3 = vector.load %arg3[%c0_3, %c0_4] : memref<8x128xf32, #tpu.memory_space<vmem>>, vector<8x128xf32>
    tpu.vector_store %arg3[%c0_3, %c0_4], %2 {strides = array<i32>} : memref<8x128xf32, #tpu.memory_space<vmem>>, vector<8x128xf32>,
    return
  }
  func.func @transform_0(%arg0: i32) -> (i32, i32) {
    %c0_i32 = arith.constant 0 : i32
    %c0_i32_0 = arith.constant 0 : i32
    return %arg0, %c0_i32 : i32, i32
  }
  func.func @transform_1(%arg0: i32) -> (i32, i32) {
    %c0_i32 = arith.constant 0 : i32
    %c0_i32_0 = arith.constant 0 : i32
    %c0_i32_1 = arith.constant 0 : i32
    return %c0_i32, %c0_i32_0 : i32, i32
  }
  func.func @transform_2(%arg0: i32) -> (i32, i32) {
    %c0_i32 = arith.constant 0 : i32
    %c0_i32_0 = arith.constant 0 : i32
    return %arg0, %c0_i32 : i32, i32
  }
}

</mosaic_0001>

<llo_original>
// kernel: tpu_custom_call.1
$region0: #{tpu_custom_call.1}
  #allocation0 [shape = 'u32[]', space=smem, size = 0x4, offset = 0x4, fixed_abs, tag = 'smem constant byte address 0x4 - core index']
  #allocation1 [shape = 'u32[144,128]{1,0:T(1,128)}', space=vmem, size = 0x12000, scoped, tag = 'internal scratch']
  %s0 = inlined_call_operand.hbm [shape: f32[8,128], index: 0, kind: input, shape index: {}]
  %s1 = inlined_call_operand.hbm [shape: f32[128,128], index: 1, kind: input, shape index: {}]
  %s2 = inlined_call_operand.hbm [shape: f32[8,128], index: 2, kind: output, shape index: {}]
  %s3 = sld [smem:[#allocation0]]
  $region26: #{tpu_custom_call.1} parent=0
    _
  %s5 = ssub.s32 1, %s3
  %s6 = scalar_select 0, %s5, %s3
  $region1: #{tpu_custom_call.1} parent=0
    #allocation2 [shape = 'u8[4096]{0}', space=vmem, size = 0x1000, scoped, tag = 'input window, operand 0, single buffered']
    #allocation3 [shape = 's32[1]{0}', space=sflag, size = 0x4, scoped, tag = 'scoped memory for tpu_custom_call.1']
    #allocation4 [shape = 's32[1]{0}', space=sflag, size = 0x4, scoped, tag = 'scoped memory for tpu_custom_call.1']
    #allocation5 [shape = 'u8[65536]{0}', space=vmem, size = 0x10000, scoped, tag = 'input window, operand 1, single buffered']
    #allocation6 [shape = 's32[1]{0}', space=sflag, size = 0x4, scoped, tag = 'scoped memory for tpu_custom_call.1']
    #allocation7 [shape = 'u8[4096]{0}', space=vmem, size = 0x1000, scoped, tag = 'output window, operand 0, single buffered']
    %7 = vsyncpa [#allocation3], 0
    %8 = vsyncpa [#allocation6], 0
    %9 = vsyncpa [#allocation4], 0
    // Predicated region
    $region2: #{tpu_custom_call.1} parent=1 // pred_check
      _
    $region3: #{tpu_custom_call.1} parent=1 // pred_check_branch
      %11 = sbr.rel (0) target = $region5
    $region4: #{tpu_custom_call.1} parent=1 // pred_region
      %s13 = ssub.s32 128, 128
      %14 = vsyncadd [#allocation3], %s13
      %s16 = sshll.u32 [#allocation2], 4
      %s17 = int_to_ptr.vmem [resolvable:$true] %s16
      %19 = dma.hbm_to_vmem [thread:$0]  %s0, 128, %s17, [#allocation3]
    $region5: #{tpu_custom_call.1} parent=1 // pred_fallthru
      _
    // Predicated region
    $region6: #{tpu_custom_call.1} parent=1 // pred_check
      _
    $region7: #{tpu_custom_call.1} parent=1 // pred_check_branch
      %21 = sbr.rel (0) target = $region9
    $region8: #{tpu_custom_call.1} parent=1 // pred_region
      %s23 = ssub.s32 2048, 2048
      %24 = vsyncadd [#allocation6], %s23
      %s25 = sshll.u32 [#allocation5], 4
      %s26 = int_to_ptr.vmem [resolvable:$true] %s25
      %31 = dma.hbm_to_vmem [thread:$0]  %s1, 2048, %s26, [#allocation6], 128, 128, 8
    $region9: #{tpu_custom_call.1} parent=1 // pred_fallthru
      _
    // Predicated region
    $region10: #{tpu_custom_call.1} parent=1 // pred_check
      _
    $region11: #{tpu_custom_call.1} parent=1 // pred_check_branch
      %33 = sbr.rel (0) target = $region13
    $region12: #{tpu_custom_call.1} parent=1 // pred_region
      %34 = dma.done [#allocation3], 128
    $region13: #{tpu_custom_call.1} parent=1 // pred_fallthru
      _
    // Predicated region
    $region14: #{tpu_custom_call.1} parent=1 // pred_check
      _
    $region15: #{tpu_custom_call.1} parent=1 // pred_check_branch
      %36 = sbr.rel (0) target = $region17
    $region16: #{tpu_custom_call.1} parent=1 // pred_region
      %37 = dma.done [#allocation6], 2048
    $region17: #{tpu_custom_call.1} parent=1 // pred_fallthru
      _
    %v38 = vld [vmem:[#allocation2] sm:$0xff]
    %v39 = vld [vmem:[#allocation5] sm:$0xff]
    %v40 = vld [vmem:[#allocation5 + $0x8] sm:$0xff]
    %v41 = vld [vmem:[#allocation5 + $0x10] sm:$0xff]
    %v42 = vld [vmem:[#allocation5 + $0x18] sm:$0xff]
    %v43 = vld [vmem:[#allocation5 + $0x20] sm:$0xff]
    %v44 = vld [vmem:[#allocation5 + $0x28] sm:$0xff]
    %v45 = vld [vmem:[#allocation5 + $0x30] sm:$0xff]
    %v46 = vld [vmem:[#allocation5 + $0x38] sm:$0xff]
    %v47 = vld [vmem:[#allocation5 + $0x40] sm:$0xff]
    %v48 = vld [vmem:[#allocation5 + $0x48] sm:$0xff]
    %v49 = vld [vmem:[#allocation5 + $0x50] sm:$0xff]
    %v50 = vld [vmem:[#allocation5 + $0x58] sm:$0xff]
    %v51 = vld [vmem:[#allocation5 + $0x60] sm:$0xff]
    %v52 = vld [vmem:[#allocation5 + $0x68] sm:$0xff]
    %v53 = vld [vmem:[#allocation5 + $0x70] sm:$0xff]
    %v54 = vld [vmem:[#allocation5 + $0x78] sm:$0xff]
    %55 = vmatprep.subr.mxu0 0.0
    %56 = vmatpush1.msra.mxu0 %v54
    %57 = vmatprep.subr.mxu0 0.0
    %58 = vmatpush1.msra.mxu0 %v53
    %59 = vmatprep.subr.mxu0 0.0
    %60 = vmatpush1.msra.mxu0 %v52
    %61 = vmatprep.subr.mxu0 0.0
    %62 = vmatpush1.msra.mxu0 %v51
    %63 = vmatprep.subr.mxu0 0.0
    %64 = vmatpush1.msra.mxu0 %v50
    %65 = vmatprep.subr.mxu0 0.0
    %66 = vmatpush1.msra.mxu0 %v49
    %67 = vmatprep.subr.mxu0 0.0
    %68 = vmatpush1.msra.mxu0 %v48
    %69 = vmatprep.subr.mxu0 0.0
    %70 = vmatpush1.msra.mxu0 %v47
    %71 = vmatprep.subr.mxu0 0.0
    %72 = vmatpush1.msra.mxu0 %v46
    %73 = vmatprep.subr.mxu0 0.0
    %74 = vmatpush1.msra.mxu0 %v45
    %75 = vmatprep.subr.mxu0 0.0
    %76 = vmatpush1.msra.mxu0 %v44
    %77 = vmatprep.subr.mxu0 0.0
    %78 = vmatpush1.msra.mxu0 %v43
    %79 = vmatprep.subr.mxu0 0.0
    %80 = vmatpush1.msra.mxu0 %v42
    %81 = vmatprep.subr.mxu0 0.0
    %82 = vmatpush1.msra.mxu0 %v41
    %83 = vmatprep.subr.mxu0 0.0
    %84 = vmatpush1.msra.mxu0 %v40
    %85 = vmatprep.subr.mxu0 0.0
    %86 = vmatpush1.msra.mxu0 %v39
    %87 = vmatprep.subr.mxu0 0.0
    %88 = vmatpush2.msra.mxu0 0.0
    %89 = vmatprep.subr.mxu0 0.0
    %90 = vmatpush2.msra.mxu0 0.0
    %91 = vmatprep.subr.mxu0 0.0
    %92 = vmatpush2.msra.mxu0 0.0
    %93 = vmatprep.subr.mxu0 0.0
    %94 = vmatpush2.msra.mxu0 0.0
    %95 = vmatprep.subr.mxu0 0.0
    %96 = vmatpush2.msra.mxu0 0.0
    %97 = vmatprep.subr.mxu0 0.0
    %98 = vmatpush2.msra.mxu0 0.0
    %99 = vmatprep.subr.mxu0 0.0
    %100 = vmatpush2.msra.mxu0 0.0
    %101 = vmatprep.subr.mxu0 0.0
    %102 = vmatpush2.msra.mxu0 0.0
    %103 = vmatprep.subr.mxu0 0.0
    %104 = vmatpush2.msra.mxu0 0.0
    %105 = vmatprep.subr.mxu0 0.0
    %106 = vmatpush2.msra.mxu0 0.0
    %107 = vmatprep.subr.mxu0 0.0
    %108 = vmatpush2.msra.mxu0 0.0
    %109 = vmatprep.subr.mxu0 0.0
    %110 = vmatpush2.msra.mxu0 0.0
    %111 = vmatprep.subr.mxu0 0.0
    %112 = vmatpush2.msra.mxu0 0.0
    %113 = vmatprep.subr.mxu0 0.0
    %114 = vmatpush2.msra.mxu0 0.0
    %115 = vmatprep.subr.mxu0 0.0
    %116 = vmatpush2.msra.mxu0 0.0
    %117 = vmatprep.subr.mxu0 0.0
    %118 = vmatpush2.msra.mxu0 0.0
    %119 = vmatprep.mubr.f32.mxu0 0.0
    %120 = vmatmul.mubr.f32.gmra.mxu0 %v38
    %v121 = vpop.f32.mrf.mxu0
    %v122 = vadd.f32 0.0, %v121
    %v123 = vpop.f32.mrf.mxu0
    %124 = vdwg.mxu0
    %125 = vst [vmem:[#allocation7] sm:$0xff] %v122
    // Predicated region
    $region18: #{tpu_custom_call.1} parent=1 // pred_check
      _
    $region19: #{tpu_custom_call.1} parent=1 // pred_check_branch
      %127 = sbr.rel (0) target = $region21
    $region20: #{tpu_custom_call.1} parent=1 // pred_region
      %s129 = ssub.s32 128, 128
      %130 = vsyncadd [#allocation4], %s129
      %s132 = sshll.u32 [#allocation7], 4
      %s133 = int_to_ptr.vmem [resolvable:$true] %s132
      %135 = dma.vmem_to_hbm [thread:$0]  %s133, 128, %s2, [#allocation4]
    $region21: #{tpu_custom_call.1} parent=1 // pred_fallthru
      _
    // Predicated region
    $region22: #{tpu_custom_call.1} parent=1 // pred_check
      _
    $region23: #{tpu_custom_call.1} parent=1 // pred_check_branch
      %137 = sbr.rel (0) target = $region25
    $region24: #{tpu_custom_call.1} parent=1 // pred_region
      %138 = dma.done [#allocation4], 128
    $region25: #{tpu_custom_call.1} parent=1 // pred_fallthru
      _
    %139 = vsyncpa [#allocation3], 1
    %140 = vsyncpa [#allocation6], 1
    %141 = vsyncpa [#allocation4], 1

// kernel: tpu_custom_call.1
$region0: #{tpu_custom_call.1}
  #allocation0 [shape = 'u32[]', space=smem, size = 0x4, offset = 0x4, fixed_abs, tag = 'smem constant byte address 0x4 - core index']
  #allocation1 [shape = 'u32[144,128]{1,0:T(1,128)}', space=vmem, size = 0x12000, scoped, tag = 'internal scratch']
  %s0 = inlined_call_operand.hbm [shape: f32[8,128], index: 0, kind: input, shape index: {}]
  %s1 = inlined_call_operand.hbm [shape: f32[128,128], index: 1, kind: input, shape index: {}]
  %s2 = inlined_call_operand.hbm [shape: f32[8,128], index: 2, kind: output, shape index: {}]
  %s3 = sld [smem:[#allocation0]]
  $region26: #{tpu_custom_call.1} parent=0
    _
  %s5 = ssub.s32 1, %s3
  %s6 = scalar_select 0, %s5, %s3
  $region1: #{tpu_custom_call.1} parent=0
    #allocation2 [shape = 'u8[4096]{0}', space=vmem, size = 0x1000, scoped, tag = 'input window, operand 0, single buffered']
    #allocation3 [shape = 's32[1]{0}', space=sflag, size = 0x4, scoped, tag = 'scoped memory for tpu_custom_call.1']
    #allocation4 [shape = 's32[1]{0}', space=sflag, size = 0x4, scoped, tag = 'scoped memory for tpu_custom_call.1']
    #allocation5 [shape = 'u8[65536]{0}', space=vmem, size = 0x10000, scoped, tag = 'input window, operand 1, single buffered']
    #allocation6 [shape = 's32[1]{0}', space=sflag, size = 0x4, scoped, tag = 'scoped memory for tpu_custom_call.1']
    #allocation7 [shape = 'u8[4096]{0}', space=vmem, size = 0x1000, scoped, tag = 'output window, operand 0, single buffered']
    %7 = vsyncpa [#allocation3], 0
    %8 = vsyncpa [#allocation6], 0
    %9 = vsyncpa [#allocation4], 0
    // Predicated region
    $region2: #{tpu_custom_call.1} parent=1 // pred_check
      _
    $region3: #{tpu_custom_call.1} parent=1 // pred_check_branch
      %11 = sbr.rel (0) target = $region5
    $region4: #{tpu_custom_call.1} parent=1 // pred_region
      %s13 = ssub.s32 128, 128
      %14 = vsyncadd [#allocation3], %s13
      %s16 = sshll.u32 [#allocation2], 4
      %s17 = int_to_ptr.vmem [resolvable:$true] %s16
      %19 = dma.hbm_to_vmem [thread:$0]  %s0, 128, %s17, [#allocation3]
    $region5: #{tpu_custom_call.1} parent=1 // pred_fallthru
      _
    // Predicated region
    $region6: #{tpu_custom_call.1} parent=1 // pred_check
      _
    $region7: #{tpu_custom_call.1} parent=1 // pred_check_branch
      %21 = sbr.rel (0) target = $region9
    $region8: #{tpu_custom_call.1} parent=1 // pred_region
      %s23 = ssub.s32 2048, 2048
      %24 = vsyncadd [#allocation6], %s23
      %s25 = sshll.u32 [#allocation5], 4
      %s26 = int_to_ptr.vmem [resolvable:$true] %s25
      %31 = dma.hbm_to_vmem [thread:$0]  %s1, 2048, %s26, [#allocation6], 128, 128, 8
    $region9: #{tpu_custom_call.1} parent=1 // pred_fallthru
      _
    // Predicated region
    $region10: #{tpu_custom_call.1} parent=1 // pred_check
      _
    $region11: #{tpu_custom_call.1} parent=1 // pred_check_branch
      %33 = sbr.rel (0) target = $region13
    $region12: #{tpu_custom_call.1} parent=1 // pred_region
      %34 = dma.done [#allocation3], 128
    $region13: #{tpu_custom_call.1} parent=1 // pred_fallthru
      _
    // Predicated region
    $region14: #{tpu_custom_call.1} parent=1 // pred_check
      _
    $region15: #{tpu_custom_call.1} parent=1 // pred_check_branch
      %36 = sbr.rel (0) target = $region17
    $region16: #{tpu_custom_call.1} parent=1 // pred_region
      %37 = dma.done [#allocation6], 2048
    $region17: #{tpu_custom_call.1} parent=1 // pred_fallthru
      _
    %v38 = vld [vmem:[#allocation2] sm:$0xff]
    %v39 = vld [vmem:[#allocation5] sm:$0xff]
    %v40 = vld [vmem:[#allocation5 + $0x8] sm:$0xff]
    %v41 = vld [vmem:[#allocation5 + $0x10] sm:$0xff]
    %v42 = vld [vmem:[#allocation5 + $0x18] sm:$0xff]
    %v43 = vld [vmem:[#allocation5 + $0x20] sm:$0xff]
    %v44 = vld [vmem:[#allocation5 + $0x28] sm:$0xff]
    %v45 = vld [vmem:[#allocation5 + $0x30] sm:$0xff]
    %v46 = vld [vmem:[#allocation5 + $0x38] sm:$0xff]
    %v47 = vld [vmem:[#allocation5 + $0x40] sm:$0xff]
    %v48 = vld [vmem:[#allocation5 + $0x48] sm:$0xff]
    %v49 = vld [vmem:[#allocation5 + $0x50] sm:$0xff]
    %v50 = vld [vmem:[#allocation5 + $0x58] sm:$0xff]
    %v51 = vld [vmem:[#allocation5 + $0x60] sm:$0xff]
    %v52 = vld [vmem:[#allocation5 + $0x68] sm:$0xff]
    %v53 = vld [vmem:[#allocation5 + $0x70] sm:$0xff]
    %v54 = vld [vmem:[#allocation5 + $0x78] sm:$0xff]
    %55 = vmatprep.subr.mxu0 0.0
    %56 = vmatpush1.msra.mxu0 %v54
    %57 = vmatprep.subr.mxu0 0.0
    %58 = vmatpush1.msra.mxu0 %v53
    %59 = vmatprep.subr.mxu0 0.0
    %60 = vmatpush1.msra.mxu0 %v52
    %61 = vmatprep.subr.mxu0 0.0
    %62 = vmatpush1.msra.mxu0 %v51
    %63 = vmatprep.subr.mxu0 0.0
    %64 = vmatpush1.msra.mxu0 %v50
    %65 = vmatprep.subr.mxu0 0.0
    %66 = vmatpush1.msra.mxu0 %v49
    %67 = vmatprep.subr.mxu0 0.0
    %68 = vmatpush1.msra.mxu0 %v48
    %69 = vmatprep.subr.mxu0 0.0
    %70 = vmatpush1.msra.mxu0 %v47
    %71 = vmatprep.subr.mxu0 0.0
    %72 = vmatpush1.msra.mxu0 %v46
    %73 = vmatprep.subr.mxu0 0.0
    %74 = vmatpush1.msra.mxu0 %v45
    %75 = vmatprep.subr.mxu0 0.0
    %76 = vmatpush1.msra.mxu0 %v44
    %77 = vmatprep.subr.mxu0 0.0
    %78 = vmatpush1.msra.mxu0 %v43
    %79 = vmatprep.subr.mxu0 0.0
    %80 = vmatpush1.msra.mxu0 %v42
    %81 = vmatprep.subr.mxu0 0.0
    %82 = vmatpush1.msra.mxu0 %v41
    %83 = vmatprep.subr.mxu0 0.0
    %84 = vmatpush1.msra.mxu0 %v40
    %85 = vmatprep.subr.mxu0 0.0
    %86 = vmatpush1.msra.mxu0 %v39
    %87 = vmatprep.subr.mxu0 0.0
    %88 = vmatpush2.msra.mxu0 0.0
    %89 = vmatprep.subr.mxu0 0.0
    %90 = vmatpush2.msra.mxu0 0.0
    %91 = vmatprep.subr.mxu0 0.0
    %92 = vmatpush2.msra.mxu0 0.0
    %93 = vmatprep.subr.mxu0 0.0
    %94 = vmatpush2.msra.mxu0 0.0
    %95 = vmatprep.subr.mxu0 0.0
    %96 = vmatpush2.msra.mxu0 0.0
    %97 = vmatprep.subr.mxu0 0.0
    %98 = vmatpush2.msra.mxu0 0.0
    %99 = vmatprep.subr.mxu0 0.0
    %100 = vmatpush2.msra.mxu0 0.0
    %101 = vmatprep.subr.mxu0 0.0
    %102 = vmatpush2.msra.mxu0 0.0
    %103 = vmatprep.subr.mxu0 0.0
    %104 = vmatpush2.msra.mxu0 0.0
    %105 = vmatprep.subr.mxu0 0.0
    %106 = vmatpush2.msra.mxu0 0.0
    %107 = vmatprep.subr.mxu0 0.0
    %108 = vmatpush2.msra.mxu0 0.0
    %109 = vmatprep.subr.mxu0 0.0
    %110 = vmatpush2.msra.mxu0 0.0
    %111 = vmatprep.subr.mxu0 0.0
    %112 = vmatpush2.msra.mxu0 0.0
    %113 = vmatprep.subr.mxu0 0.0
    %114 = vmatpush2.msra.mxu0 0.0
    %115 = vmatprep.subr.mxu0 0.0
    %116 = vmatpush2.msra.mxu0 0.0
    %117 = vmatprep.subr.mxu0 0.0
    %118 = vmatpush2.msra.mxu0 0.0
    %119 = vmatprep.mubr.f32.mxu0 0.0
    %120 = vmatmul.mubr.f32.gmra.mxu0 %v38
    %v121 = vpop.f32.mrf.mxu0
    %v122 = vadd.f32 0.0, %v121
    %v123 = vpop.f32.mrf.mxu0
    %124 = vdwg.mxu0
    %125 = vst [vmem:[#allocation7] sm:$0xff] %v122
    // Predicated region
    $region18: #{tpu_custom_call.1} parent=1 // pred_check
      _
    $region19: #{tpu_custom_call.1} parent=1 // pred_check_branch
      %127 = sbr.rel (0) target = $region21
    $region20: #{tpu_custom_call.1} parent=1 // pred_region
      %s129 = ssub.s32 128, 128
      %130 = vsyncadd [#allocation4], %s129
      %s132 = sshll.u32 [#allocation7], 4
      %s133 = int_to_ptr.vmem [resolvable:$true] %s132
      %135 = dma.vmem_to_hbm [thread:$0]  %s133, 128, %s2, [#allocation4]
    $region21: #{tpu_custom_call.1} parent=1 // pred_fallthru
      _
    // Predicated region
    $region22: #{tpu_custom_call.1} parent=1 // pred_check
      _
    $region23: #{tpu_custom_call.1} parent=1 // pred_check_branch
      %137 = sbr.rel (0) target = $region25
    $region24: #{tpu_custom_call.1} parent=1 // pred_region
      %138 = dma.done [#allocation4], 128
    $region25: #{tpu_custom_call.1} parent=1 // pred_fallthru
      _
    %139 = vsyncpa [#allocation3], 1
    %140 = vsyncpa [#allocation6], 1
    %141 = vsyncpa [#allocation4], 1

</llo_original>
